<compile_context>
chip_gen: v7x
topology: tpu7x:2x2x1
jax: 0.10.0
libtpu: 0.0.40
codegen_flags: <defaults>
</compile_context>

<pallas_src>
import math

import jax
import jax.numpy as jnp
import numpy as np
from jax.experimental import pallas as pl
from jax.experimental.pallas import tpu as pltpu

# --------------------------------------------------------------------------
# Sizes (small, consistent with the module: obs_dim -> hidden_sizes -> act_dim)
# --------------------------------------------------------------------------
BATCH = 8
OBS_DIM = 16
HIDDEN_SIZES = (32, 32)
ACT_DIM = 8
ACTIVATION = jnp.tanh  # the `activation` passed to MLPGaussianActor (nn.Tanh)

H1, H2 = HIDDEN_SIZES
assert H1 == H2, "fused block-diagonal packing assumes equal hidden sizes"
D2 = 2 * H1                      # fused hidden width (mu path | std path) = 64
IN_W = OBS_DIM + ACT_DIM         # fused input width: [obs | act] = 24
OUT_LANES = 128                  # lane-dense output slab width
_K_LOG_2PI = float(ACT_DIM) * math.log(2.0 * math.pi)   # constant-folds


def _round_up(x, m):
    return ((x + m - 1) // m) * m


# Row offsets into the packed (N_ROWS, D2) parameter buffer. Every section
# starts on an 8-row (f32 sublane-tile) boundary so in-kernel slices never
# straddle a tile with a sublane offset.
R_W1 = 0                                 # (OBS_DIM, D2)  fused layer-1 weight
R_B1 = _round_up(R_W1 + OBS_DIM, 8)      # (1, D2)        fused layer-1 bias
R_W2 = _round_up(R_B1 + 1, 8)            # (D2, D2)       block-diag layer-2 weight
R_B2 = _round_up(R_W2 + D2, 8)           # (1, D2)        fused layer-2 bias
R_W3 = _round_up(R_B2 + 1, 8)            # (D2, D2)       block-diag layer-3 weight (cols 0:2A live)
R_B3 = _round_up(R_W3 + D2, 8)           # (1, D2)        fused layer-3 bias (cols 0:2A live)
N_ROWS = _round_up(R_B3 + 1, 8)          # total packed rows (= 168 here)


# --------------------------------------------------------------------------
# Pallas kernel: 3 fused matmuls + tanh + softplus + fused log-prob reduction,
# single lane-dense output store.
# --------------------------------------------------------------------------
def actor_kernel(x_ref, p_ref, out_ref):
    x = x_ref[...]                                       # (bm, IN_W) = [obs | act]
    obs = x[:, :OBS_DIM]                                 # (bm, OBS_DIM)
    act = x[:, OBS_DIM:IN_W]                             # (bm, ACT_DIM)
    bm = x.shape[0]
    A = ACT_DIM

    w1 = p_ref[R_W1:R_W1 + OBS_DIM, :]                   # (OBS_DIM, D2)
    b1 = p_ref[R_B1:R_B1 + 1, :]                         # (1, D2)
    w2 = p_ref[R_W2:R_W2 + D2, :]                        # (D2, D2)
    b2 = p_ref[R_B2:R_B2 + 1, :]                         # (1, D2)
    w3 = p_ref[R_W3:R_W3 + D2, :]                        # (D2, D2) (cols 0:2A live)
    b3 = p_ref[R_B3:R_B3 + 1, :]                         # (1, D2)  (cols 0:2A live)

    # Fused MLP: cols [0:H1] carry the mu path, cols [H1:D2] the std path.
    h = ACTIVATION(jnp.dot(obs, w1, preferred_element_type=jnp.float32) + b1)
    h = ACTIVATION(jnp.dot(h, w2, preferred_element_type=jnp.float32) + b2)
    y = jnp.dot(h, w3, preferred_element_type=jnp.float32) + b3     # (bm, D2)
    # y lanes [0:A] = mean, [A:2A] = std-net pre-activation, [2A:D2] = dead.

    # Pad y to the full 128-lane output width once (cheap; single vreg copy).
    y128 = jnp.concatenate(
        [y, jnp.zeros((bm, OUT_LANES - D2), jnp.float32)], axis=1)   # (bm, 128)

    # Softplus (beta=1), numerically stable, applied lane-wide (only lanes
    # [A:2A] are ever selected/used; the rest is free VPU/EUP filler):
    #   softplus(x) = max(x, 0) + log1p(exp(-|x|))
    sp128 = jnp.maximum(y128, 0.0) + jnp.log1p(jnp.exp(-jnp.abs(y128)))

    mean = y[:, :A]                                      # (bm, A)
    var = sp128[:, A:2 * A]                              # (bm, A)  covariance diag

    # MultivariateNormal(mean, diag(var)).log_prob(act) with one fused
    # cross-lane reduction. Tiny clamp guards f32 softplus underflow only in
    # the log-prob math (stored var is the exact softplus output).
    var_safe = jnp.maximum(var, 1e-30)
    diff = act - mean
    inv_var = pl.reciprocal(var_safe, approx=False)      # EUP slot, exact
    s = diff * diff * inv_var + jnp.log(var_safe)        # (bm, A)
    logp = -0.5 * (jnp.sum(s, axis=-1, keepdims=True) + _K_LOG_2PI)  # (bm, 1)

    # Assemble the full output row in-register and emit ONE unmasked,
    # lane-dense store: lanes [0:A]=mean, [A:2A]=var, lane 2A=logp.
    lane = jax.lax.broadcasted_iota(jnp.int32, (bm, OUT_LANES), 1)
    logp128 = jnp.broadcast_to(logp, (bm, OUT_LANES))
    out = jnp.where(lane < A, y128, jnp.where(lane < 2 * A, sp128, logp128))
    out_ref[...] = out


# --------------------------------------------------------------------------
# Host-side parameter packing (done once, outside the hot path)
# PyTorch-layout weights are stored transposed, i.e. (in, out); biases (1, out).
# --------------------------------------------------------------------------
def pack_params(params):
    (mw1, mb1, mw2, mb2, mw3, mb3,
     sw1, sb1, sw2, sb2, sw3, sb3) = params

    A = ACT_DIM
    # Fused layer 1: concatenate along the output dim.
    w1 = jnp.concatenate([mw1, sw1], axis=1)             # (OBS_DIM, D2)
    b1 = jnp.concatenate([mb1, sb1], axis=1)             # (1, D2)
    # Fused layer 2: block-diagonal.
    w2 = jnp.zeros((D2, D2), jnp.float32)
    w2 = w2.at[:H1, :H1].set(mw2).at[H1:, H1:].set(sw2)
    b2 = jnp.concatenate([mb2, sb2], axis=1)             # (1, D2)
    # Fused layer 3: block-diagonal, padded to D2 output cols (only 0:2A live).
    w3 = jnp.zeros((D2, D2), jnp.float32)
    w3 = w3.at[:H1, :A].set(mw3).at[H1:, A:2 * A].set(sw3)
    b3 = jnp.zeros((1, D2), jnp.float32)
    b3 = b3.at[:, :A].set(mb3).at[:, A:2 * A].set(sb3)

    buf = jnp.zeros((N_ROWS, D2), jnp.float32)
    buf = buf.at[R_W1:R_W1 + OBS_DIM, :].set(w1)
    buf = buf.at[R_B1:R_B1 + 1, :].set(b1)
    buf = buf.at[R_W2:R_W2 + D2, :].set(w2)
    buf = buf.at[R_B2:R_B2 + 1, :].set(b2)
    buf = buf.at[R_W3:R_W3 + D2, :].set(w3)
    buf = buf.at[R_B3:R_B3 + 1, :].set(b3)
    return buf


# --------------------------------------------------------------------------
# Wrapper. Takes the fused [obs | act] buffer (one input DMA) + packed params.
# Scales to large batches via a 1-D parallel grid over the batch axis
# (uses both TensorCores on v7x; single block at small batch).
# --------------------------------------------------------------------------
def mlp_gaussian_actor(obs_act, packed_params, *, block_rows=None):
    """obs_act: (B, OBS_DIM+ACT_DIM) f32, laid out [obs | act].
    Returns (mean, var, log_prob). `var` is the covariance diagonal (what
    PyTorch's diag_embed(softplus(std_net(obs))) produces)."""
    B = obs_act.shape[0]
    if block_rows is None:
        block_rows = min(_round_up(B, 8), 256)
    bm = block_rows
    Bp = _round_up(B, bm)
    if Bp != B:
        obs_act = jnp.pad(obs_act, ((0, Bp - B), (0, 0)))

    out = pl.pallas_call(
        actor_kernel,
        out_shape=jax.ShapeDtypeStruct((Bp, OUT_LANES), jnp.float32),
        grid_spec=pltpu.PrefetchScalarGridSpec(
            num_scalar_prefetch=0,
            grid=(Bp // bm,),
            in_specs=[pl.BlockSpec((bm, IN_W), lambda i: (i, 0)),
                      pl.BlockSpec((N_ROWS, D2), lambda i: (0, 0))],
            out_specs=pl.BlockSpec((bm, OUT_LANES), lambda i: (i, 0))),
        compiler_params=pltpu.CompilerParams(
            dimension_semantics=("parallel",)),
    )(obs_act, packed_params)

    mean = out[:B, :ACT_DIM]
    var = out[:B, ACT_DIM:2 * ACT_DIM]
    logp = out[:B, 2 * ACT_DIM]
    return mean, var, logp


# --------------------------------------------------------------------------
# Deterministic parameter init (mimics PyTorch Linear default: U(-1/sqrt(in), +))
# Weights stored as (in, out); biases as (1, out).
# --------------------------------------------------------------------------
def init_params(key):
    sizes = [OBS_DIM] + list(HIDDEN_SIZES) + [ACT_DIM]
    params = []
    for _net in range(2):  # mu_net, std_net
        for j in range(len(sizes) - 1):
            fan_in, fan_out = sizes[j], sizes[j + 1]
            key, kw, kb = jax.random.split(key, 3)
            bound = 1.0 / np.sqrt(fan_in)
            w = jax.random.uniform(kw, (fan_in, fan_out), jnp.float32,
                                   minval=-bound, maxval=bound)
            b = jax.random.uniform(kb, (1, fan_out), jnp.float32,
                                   minval=-bound, maxval=bound)
            params += [w, b]
    return params


# --------------------------------------------------------------------------
# Pure-JAX reference for a correctness check (unfused, like the PyTorch module)
# --------------------------------------------------------------------------
def reference(obs, act, params):
    (mw1, mb1, mw2, mb2, mw3, mb3,
     sw1, sb1, sw2, sb2, sw3, sb3) = params

    def net(x, w1, b1, w2, b2, w3, b3):
        h = ACTIVATION(x @ w1 + b1)
        h = ACTIVATION(h @ w2 + b2)
        return h @ w3 + b3

    mean = net(obs, mw1, mb1, mw2, mb2, mw3, mb3)
    var = jax.nn.softplus(net(obs, sw1, sb1, sw2, sb2, sw3, sb3))
    diff = act - mean
    k = act.shape[-1]
    logp = -0.5 * (jnp.sum(diff * diff / var, axis=-1)
                   + jnp.sum(jnp.log(var), axis=-1)
                   + k * jnp.log(2.0 * jnp.pi))
    return mean, var, logp


if __name__ == "__main__":
    key = jax.random.PRNGKey(0)
    key, k_obs, k_act = jax.random.split(key, 3)
    obs = jax.random.normal(k_obs, (BATCH, OBS_DIM), jnp.float32)
    act = jax.random.normal(k_act, (BATCH, ACT_DIM), jnp.float32)
    params = init_params(key)
    packed = pack_params(params)

    # Single-block path (B=8). The producer can emit [obs | act] fused; here we
    # concatenate once in the wrapper, outside the kernel's hot path.
    obs_act = jnp.concatenate([obs, act], axis=1)
    mean, var, logp = mlp_gaussian_actor(obs_act, packed)
    jax.block_until_ready((mean, var, logp))

    mean_r, var_r, logp_r = reference(obs, act, params)
    assert np.allclose(np.asarray(mean), np.asarray(mean_r), atol=1e-4, rtol=1e-4)
    assert np.allclose(np.asarray(var), np.asarray(var_r), atol=1e-4, rtol=1e-4)
    assert np.allclose(np.asarray(logp), np.asarray(logp_r), atol=1e-3, rtol=1e-3)

    # Multi-block grid + padded-batch path (exercises the parallel batch grid).
    key, k_obs2, k_act2 = jax.random.split(key, 3)
    B2 = 20
    obs2 = jax.random.normal(k_obs2, (B2, OBS_DIM), jnp.float32)
    act2 = jax.random.normal(k_act2, (B2, ACT_DIM), jnp.float32)
    mean2, var2, logp2 = mlp_gaussian_actor(
        jnp.concatenate([obs2, act2], axis=1), packed, block_rows=8)
    jax.block_until_ready((mean2, var2, logp2))

    mean2_r, var2_r, logp2_r = reference(obs2, act2, params)
    assert np.allclose(np.asarray(mean2), np.asarray(mean2_r), atol=1e-4, rtol=1e-4)
    assert np.allclose(np.asarray(var2), np.asarray(var2_r), atol=1e-4, rtol=1e-4)
    assert np.allclose(np.asarray(logp2), np.asarray(logp2_r), atol=1e-3, rtol=1e-3)

    # TODO(synk): the torch.distributions.MultivariateNormal object itself is not
    # constructed; the kernel returns its sufficient statistics (mean, cov diag)
    # plus log_prob, which is everything the forward pass computes.
    print("KERNEL_OK")
</pallas_src>

<mosaic_0001>
module attributes {stable_mosaic.version = 11 : i64} {
  func.func @actor_kernel(%arg0: i32, %arg1: memref<8x24xf32, #tpu.memory_space<vmem>>, %arg2: memref<168x64xf32, #tpu.memory_space<vmem>>, %arg3: memref<8x128xf32, #tpu.memory_space<vmem>>) attributes {dimension_semantics = [#tpu.dimension_semantics<parallel>], iteration_bounds = array<i64: 1>, scalar_prefetch = 0 : i64, scratch_operands = 0 : i64, tpu.core_type = #tpu.core_type<tc>, window_params = [{transform_indices = @transform_0, window_bounds = array<i64: 8, 24>}, {pipeline_mode = #tpu.pipeline_mode<synchronous>, transform_indices = @transform_1, window_bounds = array<i64: 168, 64>}, {transform_indices = @transform_2, window_bounds = array<i64: 8, 128>}]} {
    %c0 = arith.constant 0 : index
    %c0_0 = arith.constant 0 : index
    %0 = vector.load %arg1[%c0, %c0_0] : memref<8x24xf32, #tpu.memory_space<vmem>>, vector<8x24xf32>
    %1 = vector.extract_strided_slice %0 {offsets = [0, 0], sizes = [8, 16], strides = [1, 1]} : vector<8x24xf32> to vector<8x16xf32>
    %2 = vector.extract_strided_slice %0 {offsets = [0, 16], sizes = [8, 8], strides = [1, 1]} : vector<8x24xf32> to vector<8x8xf32>
    %c0_1 = arith.constant 0 : index
    %c0_2 = arith.constant 0 : index
    %3 = vector.load %arg2[%c0_1, %c0_2] : memref<168x64xf32, #tpu.memory_space<vmem>>, vector<16x64xf32>
    %c16 = arith.constant 16 : index
    %c0_3 = arith.constant 0 : index
    %4 = vector.load %arg2[%c16, %c0_3] : memref<168x64xf32, #tpu.memory_space<vmem>>, vector<1x64xf32>
    %c24 = arith.constant 24 : index
    %c0_4 = arith.constant 0 : index
    %5 = vector.load %arg2[%c24, %c0_4] : memref<168x64xf32, #tpu.memory_space<vmem>>, vector<64x64xf32>
    %c88 = arith.constant 88 : index
    %c0_5 = arith.constant 0 : index
    %6 = vector.load %arg2[%c88, %c0_5] : memref<168x64xf32, #tpu.memory_space<vmem>>, vector<1x64xf32>
    %c96 = arith.constant 96 : index
    %c0_6 = arith.constant 0 : index
    %7 = vector.load %arg2[%c96, %c0_6] : memref<168x64xf32, #tpu.memory_space<vmem>>, vector<64x64xf32>
    %c160 = arith.constant 160 : index
    %c0_7 = arith.constant 0 : index
    %8 = vector.load %arg2[%c160, %c0_7] : memref<168x64xf32, #tpu.memory_space<vmem>>, vector<1x64xf32>
    %cst = arith.constant dense<0.000000e+00> : vector<8x64xf32>
    %9 = tpu.matmul %1, %3, %cst {dimension_numbers = #tpu.dot_dimension_numbers<[1], [0], [0], [1], [0, 0, 1, 1], [], []>} : vector<8x16xf32>, vector<16x64xf32>, vector<8x64xf32> -> vector<8x64xf32>
    %10 = vector.broadcast %4 : vector<1x64xf32> to vector<8x64xf32>
    %11 = arith.addf %9, %10 : vector<8x64xf32>
    %12 = math.tanh %11 : vector<8x64xf32>
    %cst_8 = arith.constant dense<0.000000e+00> : vector<8x64xf32>
    %13 = tpu.matmul %12, %5, %cst_8 {dimension_numbers = #tpu.dot_dimension_numbers<[1], [0], [0], [1], [0, 0, 1, 1], [], []>} : vector<8x64xf32>, vector<64x64xf32>, vector<8x64xf32> -> vector<8x64xf32>
    %14 = vector.broadcast %6 : vector<1x64xf32> to vector<8x64xf32>
    %15 = arith.addf %13, %14 : vector<8x64xf32>
    %16 = math.tanh %15 : vector<8x64xf32>
    %cst_9 = arith.constant dense<0.000000e+00> : vector<8x64xf32>
    %17 = tpu.matmul %16, %7, %cst_9 {dimension_numbers = #tpu.dot_dimension_numbers<[1], [0], [0], [1], [0, 0, 1, 1], [], []>} : vector<8x64xf32>, vector<64x64xf32>, vector<8x64xf32> -> vector<8x64xf32>
    %18 = vector.broadcast %8 : vector<1x64xf32> to vector<8x64xf32>
    %19 = arith.addf %17, %18 : vector<8x64xf32>
    %cst_10 = arith.constant 0.000000e+00 : f32
    %20 = vector.broadcast %cst_10 : f32 to vector<8x64xf32>
    %21 = tpu.concatenate %19, %20 in 1 : vector<8x64xf32>, vector<8x64xf32> -> vector<8x128xf32>
    %cst_11 = arith.constant 0.000000e+00 : f32
    %22 = vector.broadcast %cst_11 : f32 to vector<8x128xf32>
    %23 = arith.maximumf %21, %22 : vector<8x128xf32>
    %24 = math.absf %21 : vector<8x128xf32>
    %cst_12 = arith.constant 0.000000e+00 : f32
    %25 = vector.broadcast %cst_12 : f32 to vector<8x128xf32>
    %26 = arith.subf %25, %24 : vector<8x128xf32>
    %27 = math.exp %26 : vector<8x128xf32>
    %28 = math.log1p %27 : vector<8x128xf32>
    %29 = arith.addf %23, %28 : vector<8x128xf32>
    %30 = vector.extract_strided_slice %19 {offsets = [0, 0], sizes = [8, 8], strides = [1, 1]} : vector<8x64xf32> to vector<8x8xf32>
    %31 = vector.extract_strided_slice %29 {offsets = [0, 8], sizes = [8, 8], strides = [1, 1]} : vector<8x128xf32> to vector<8x8xf32>
    %cst_13 = arith.constant 1.000000e-30 : f32
    %32 = vector.broadcast %cst_13 : f32 to vector<8x8xf32>
    %33 = arith.maximumf %31, %32 : vector<8x8xf32>
    %34 = arith.subf %2, %30 : vector<8x8xf32>
    %35 = tpu.reciprocal %33 : vector<8x8xf32> -> vector<8x8xf32>
    %36 = arith.mulf %34, %34 : vector<8x8xf32>
    %37 = arith.mulf %36, %35 : vector<8x8xf32>
    %38 = math.log %33 : vector<8x8xf32>
    %39 = arith.addf %37, %38 : vector<8x8xf32>
    %cst_14 = arith.constant dense<0.000000e+00> : vector<8xf32>
    %40 = vector.multi_reduction <add>, %39, %cst_14 [1] : vector<8x8xf32> to vector<8xf32>
    %41 = vector.shape_cast %40 : vector<8xf32> to vector<8x1xf32>
    %cst_15 = arith.constant 14.7030163 : f32
    %42 = vector.broadcast %cst_15 : f32 to vector<8x1xf32>
    %43 = arith.addf %41, %42 : vector<8x1xf32>
    %cst_16 = arith.constant -5.000000e-01 : f32
    %44 = vector.broadcast %cst_16 : f32 to vector<8x1xf32>
    %45 = arith.mulf %44, %43 : vector<8x1xf32>
    %46 = tpu.iota {dimensions = array<i32: 1>} : vector<8x128xi32>
    %47 = vector.shape_cast %45 : vector<8x1xf32> to vector<8x1xf32>
    %48 = vector.broadcast %47 : vector<8x1xf32> to vector<8x128xf32>
    %c8_i32 = arith.constant 8 : i32
    %49 = vector.broadcast %c8_i32 : i32 to vector<8x128xi32>
    %50 = arith.cmpi slt, %46, %49 : vector<8x128xi32>
    %c16_i32 = arith.constant 16 : i32
    %51 = vector.broadcast %c16_i32 : i32 to vector<8x128xi32>
    %52 = arith.cmpi slt, %46, %51 : vector<8x128xi32>
    %53 = arith.select %52, %29, %48 : vector<8x128xi1>, vector<8x128xf32>
    %54 = arith.select %50, %21, %53 : vector<8x128xi1>, vector<8x128xf32>
    %c0_17 = arith.constant 0 : index
    %c0_18 = arith.constant 0 : index
    %55 = vector.load %arg3[%c0_17, %c0_18] : memref<8x128xf32, #tpu.memory_space<vmem>>, vector<8x128xf32>
    tpu.vector_store %arg3[%c0_17, %c0_18], %54 {strides = array<i32>} : memref<8x128xf32, #tpu.memory_space<vmem>>, vector<8x128xf32>,
    return
  }
  func.func @transform_0(%arg0: i32) -> (i32, i32) {
    %c0_i32 = arith.constant 0 : i32
    %c0_i32_0 = arith.constant 0 : i32
    return %arg0, %c0_i32 : i32, i32
  }
  func.func @transform_1(%arg0: i32) -> (i32, i32) {
    %c0_i32 = arith.constant 0 : i32
    %c0_i32_0 = arith.constant 0 : i32
    %c0_i32_1 = arith.constant 0 : i32
    return %c0_i32, %c0_i32_0 : i32, i32
  }
  func.func @transform_2(%arg0: i32) -> (i32, i32) {
    %c0_i32 = arith.constant 0 : i32
    %c0_i32_0 = arith.constant 0 : i32
    return %arg0, %c0_i32 : i32, i32
  }
}

</mosaic_0001>

<llo_original>
// kernel: tpu_custom_call.1
$region0: #{tpu_custom_call.1}
  #allocation0 [shape = 'u32[]', space=smem, size = 0x4, offset = 0x4, fixed_abs, tag = 'smem constant byte address 0x4 - core index']
  #allocation1 [shape = 'u32[144,128]{1,0:T(1,128)}', space=vmem, size = 0x12000, scoped, tag = 'internal scratch']
  %s0 = inlined_call_operand.vmem [shape: f32[8,24], index: 0, kind: input, shape index: {}]
  %s1 = inlined_call_operand.vmem [shape: f32[168,64], index: 1, kind: input, shape index: {}]
  %s2 = inlined_call_operand.hbm [shape: f32[8,128], index: 2, kind: output, shape index: {}]
  %s3 = sld [smem:[#allocation0]]
  $region18: #{tpu_custom_call.1} parent=0
    _
  %s5 = ssub.s32 1, %s3
  %s6 = scalar_select 0, %s5, %s3
  $region1: #{tpu_custom_call.1} parent=0
    #allocation2 [shape = 'u8[4096]{0}', space=vmem, size = 0x1000, scoped, tag = 'output window, operand 0, single buffered']
    #allocation3 [shape = 's32[1]{0}', space=sflag, size = 0x4, scoped, tag = 'scoped memory for tpu_custom_call.1']
    %7 = vsyncpa [#allocation3], 0
    // Predicated region
    $region2: #{tpu_custom_call.1} parent=1 // pred_check
      _
    $region3: #{tpu_custom_call.1} parent=1 // pred_check_branch
      %9 = sbr.rel (0) target = $region5
    $region4: #{tpu_custom_call.1} parent=1 // pred_region
      _
    $region5: #{tpu_custom_call.1} parent=1 // pred_fallthru
      _
    // Predicated region
    $region6: #{tpu_custom_call.1} parent=1 // pred_check
      _
    $region7: #{tpu_custom_call.1} parent=1 // pred_check_branch
      %11 = sbr.rel (0) target = $region9
    $region8: #{tpu_custom_call.1} parent=1 // pred_region
      _
    $region9: #{tpu_custom_call.1} parent=1 // pred_fallthru
      _
    %v12 = vld [vmem:[%s0] sm:$0xff]
    %v13 = vld [vmem:[%s1] sm:$0xff]
    %v14 = vld [vmem:[%s1 + $0x8] sm:$0xff]
    %v15 = vld [vmem:[%s1 + $0x10] sm:$0x1]
    %v16 = vld [vmem:[%s1 + $0x18] sm:$0xff]
    %v17 = vld [vmem:[%s1 + $0x20] sm:$0xff]
    %v18 = vld [vmem:[%s1 + $0x28] sm:$0xff]
    %v19 = vld [vmem:[%s1 + $0x30] sm:$0xff]
    %v20 = vld [vmem:[%s1 + $0x38] sm:$0xff]
    %v21 = vld [vmem:[%s1 + $0x40] sm:$0xff]
    %v22 = vld [vmem:[%s1 + $0x48] sm:$0xff]
    %v23 = vld [vmem:[%s1 + $0x50] sm:$0xff]
    %v24 = vld [vmem:[%s1 + $0x58] sm:$0x1]
    %v25 = vld [vmem:[%s1 + $0x60] sm:$0xff]
    %v26 = vld [vmem:[%s1 + $0x68] sm:$0xff]
    %v27 = vld [vmem:[%s1 + $0x70] sm:$0xff]
    %v28 = vld [vmem:[%s1 + $0x78] sm:$0xff]
    %v29 = vld [vmem:[%s1 + $0x80] sm:$0xff]
    %v30 = vld [vmem:[%s1 + $0x88] sm:$0xff]
    %v31 = vld [vmem:[%s1 + $0x90] sm:$0xff]
    %v32 = vld [vmem:[%s1 + $0x98] sm:$0xff]
    %v33 = vld [vmem:[%s1 + $0xa0] sm:$0x1]
    %v34 = vlaneseq
    %v35 = vshrl.u32 %v34, 7
    %v36 = vsub.s32 0, %v35
    %v37 = vrot.slane %v15, %v36
    %vm38 = vcmask 130048
    %v40 = vsel %vm38, %v12, 0
    %42 = vmatprep.subr.mxu0 0.0
    %43 = vmatpush1.msra.mxu0 %v13
    %44 = vmatprep.subr.mxu0 0.0
    %45 = vmatpush1.msra.mxu0 %v14
    %46 = vmatprep.subr.mxu0 0.0
    %47 = vmatpush1.msra.mxu0 0.0
    %48 = vmatprep.subr.mxu0 0.0
    %49 = vmatpush1.msra.mxu0 0.0
    %50 = vmatprep.subr.mxu0 0.0
    %51 = vmatpush1.msra.mxu0 0.0
    %52 = vmatprep.subr.mxu0 0.0
    %53 = vmatpush1.msra.mxu0 0.0
    %54 = vmatprep.subr.mxu0 0.0
    %55 = vmatpush1.msra.mxu0 0.0
    %56 = vmatprep.subr.mxu0 0.0
    %57 = vmatpush1.msra.mxu0 0.0
    %58 = vmatprep.subr.mxu0 0.0
    %59 = vmatpush1.msra.mxu0 0.0
    %60 = vmatprep.subr.mxu0 0.0
    %61 = vmatpush1.msra.mxu0 0.0
    %62 = vmatprep.subr.mxu0 0.0
    %63 = vmatpush1.msra.mxu0 0.0
    %64 = vmatprep.subr.mxu0 0.0
    %65 = vmatpush1.msra.mxu0 0.0
    %66 = vmatprep.subr.mxu0 0.0
    %67 = vmatpush1.msra.mxu0 0.0
    %68 = vmatprep.subr.mxu0 0.0
    %69 = vmatpush1.msra.mxu0 0.0
    %70 = vmatprep.subr.mxu0 0.0
    %71 = vmatpush1.msra.mxu0 0.0
    %72 = vmatprep.subr.mxu0 0.0
    %73 = vmatpush1.msra.mxu0 0.0
    %74 = vmatprep.subr.mxu0 0.0
    %75 = vmatpush1.msra.mxu0 0.0
    %76 = vmatprep.subr.mxu0 0.0
    %77 = vmatpush1.msra.mxu0 0.0
    %78 = vmatprep.subr.mxu0 0.0
    %79 = vmatpush1.msra.mxu0 0.0
    %80 = vmatprep.subr.mxu0 0.0
    %81 = vmatpush1.msra.mxu0 0.0
    %82 = vmatprep.subr.mxu0 0.0
    %83 = vmatpush1.msra.mxu0 0.0
    %84 = vmatprep.subr.mxu0 0.0
    %85 = vmatpush1.msra.mxu0 0.0
    %86 = vmatprep.subr.mxu0 0.0
    %87 = vmatpush1.msra.mxu0 0.0
    %88 = vmatprep.subr.mxu0 0.0
    %89 = vmatpush1.msra.mxu0 0.0
    %90 = vmatprep.subr.mxu0 0.0
    %91 = vmatpush1.msra.mxu0 0.0
    %92 = vmatprep.subr.mxu0 0.0
    %93 = vmatpush1.msra.mxu0 0.0
    %94 = vmatprep.subr.mxu0 0.0
    %95 = vmatpush1.msra.mxu0 0.0
    %96 = vmatprep.subr.mxu0 0.0
    %97 = vmatpush1.msra.mxu0 0.0
    %98 = vmatprep.subr.mxu0 0.0
    %99 = vmatpush1.msra.mxu0 0.0
    %100 = vmatprep.subr.mxu0 0.0
    %101 = vmatpush1.msra.mxu0 0.0
    %102 = vmatprep.subr.mxu0 0.0
    %103 = vmatpush1.msra.mxu0 0.0
    %104 = vmatprep.subr.mxu0 0.0
    %105 = vmatpush1.msra.mxu0 0.0
    %106 = vmatprep.mubr.f32.mxu0 0.0
    %107 = vmatmul.mubr.f32.gmra.mrb[0].mxu0 %v40
    %v108 = vpop.f32.mrb[0].mxu0
    %v109 = vadd.f32 %v37, %v108
    %v110 = vpop.f32.mrb[0].mxu0
    %111 = vdwg.mxu0
    %v112 = vtanh.pop %v109
    %v113 = vlaneseq
    %v114 = vshrl.u32 %v113, 7
    %v115 = vsub.s32 0, %v114
    %v116 = vrot.slane %v24, %v115
    %vm117 = vcmask 523264
    %v119 = vsel %vm117, %v112, 0
    %121 = vmatprep.subr.mxu0 0.0
    %122 = vmatpush1.msra.mxu0 %v16
    %123 = vmatprep.subr.mxu0 0.0
    %124 = vmatpush1.msra.mxu0 %v17
    %125 = vmatprep.subr.mxu0 0.0
    %126 = vmatpush1.msra.mxu0 %v18
    %127 = vmatprep.subr.mxu0 0.0
    %128 = vmatpush1.msra.mxu0 %v19
    %129 = vmatprep.subr.mxu0 0.0
    %130 = vmatpush1.msra.mxu0 %v20
    %131 = vmatprep.subr.mxu0 0.0
    %132 = vmatpush1.msra.mxu0 %v21
    %133 = vmatprep.subr.mxu0 0.0
    %134 = vmatpush1.msra.mxu0 %v22
    %135 = vmatprep.subr.mxu0 0.0
    %136 = vmatpush1.msra.mxu0 %v23
    %137 = vmatprep.subr.mxu0 0.0
    %138 = vmatpush1.msra.mxu0 0.0
    %139 = vmatprep.subr.mxu0 0.0
    %140 = vmatpush1.msra.mxu0 0.0
    %141 = vmatprep.subr.mxu0 0.0
    %142 = vmatpush1.msra.mxu0 0.0
    %143 = vmatprep.subr.mxu0 0.0
    %144 = vmatpush1.msra.mxu0 0.0
    %145 = vmatprep.subr.mxu0 0.0
    %146 = vmatpush1.msra.mxu0 0.0
    %147 = vmatprep.subr.mxu0 0.0
    %148 = vmatpush1.msra.mxu0 0.0
    %149 = vmatprep.subr.mxu0 0.0
    %150 = vmatpush1.msra.mxu0 0.0
    %151 = vmatprep.subr.mxu0 0.0
    %152 = vmatpush1.msra.mxu0 0.0
    %153 = vmatprep.subr.mxu0 0.0
    %154 = vmatpush1.msra.mxu0 0.0
    %155 = vmatprep.subr.mxu0 0.0
    %156 = vmatpush1.msra.mxu0 0.0
    %157 = vmatprep.subr.mxu0 0.0
    %158 = vmatpush1.msra.mxu0 0.0
    %159 = vmatprep.subr.mxu0 0.0
    %160 = vmatpush1.msra.mxu0 0.0
    %161 = vmatprep.subr.mxu0 0.0
    %162 = vmatpush1.msra.mxu0 0.0
    %163 = vmatprep.subr.mxu0 0.0
    %164 = vmatpush1.msra.mxu0 0.0
    %165 = vmatprep.subr.mxu0 0.0
    %166 = vmatpush1.msra.mxu0 0.0
    %167 = vmatprep.subr.mxu0 0.0
    %168 = vmatpush1.msra.mxu0 0.0
    %169 = vmatprep.subr.mxu0 0.0
    %170 = vmatpush1.msra.mxu0 0.0
    %171 = vmatprep.subr.mxu0 0.0
    %172 = vmatpush1.msra.mxu0 0.0
    %173 = vmatprep.subr.mxu0 0.0
    %174 = vmatpush1.msra.mxu0 0.0
    %175 = vmatprep.subr.mxu0 0.0
    %176 = vmatpush1.msra.mxu0 0.0
    %177 = vmatprep.subr.mxu0 0.0
    %178 = vmatpush1.msra.mxu0 0.0
    %179 = vmatprep.subr.mxu0 0.0
    %180 = vmatpush1.msra.mxu0 0.0
    %181 = vmatprep.subr.mxu0 0.0
    %182 = vmatpush1.msra.mxu0 0.0
    %183 = vmatprep.subr.mxu0 0.0
    %184 = vmatpush1.msra.mxu0 0.0
    %185 = vmatprep.mubr.f32.mxu0 0.0
    %186 = vmatmul.mubr.f32.gmra.mrb[0].mxu0 %v119
    %v187 = vpop.f32.mrb[0].mxu0
    %v188 = vadd.f32 %v116, %v187
    %v189 = vpop.f32.mrb[0].mxu0
    %190 = vdwg.mxu0
    %v191 = vtanh.pop %v188
    %v192 = vlaneseq
    %v193 = vshrl.u32 %v192, 7
    %v194 = vsub.s32 0, %v193
    %v195 = vrot.slane %v33, %v194
    %v197 = vsel %vm117, %v191, 0
    %199 = vmatprep.subr.mxu0 0.0
    %200 = vmatpush1.msra.mxu0 %v25
    %201 = vmatprep.subr.mxu0 0.0
    %202 = vmatpush1.msra.mxu0 %v26
    %203 = vmatprep.subr.mxu0 0.0
    %204 = vmatpush1.msra.mxu0 %v27
    %205 = vmatprep.subr.mxu0 0.0
    %206 = vmatpush1.msra.mxu0 %v28
    %207 = vmatprep.subr.mxu0 0.0
    %208 = vmatpush1.msra.mxu0 %v29
    %209 = vmatprep.subr.mxu0 0.0
    %210 = vmatpush1.msra.mxu0 %v30
    %211 = vmatprep.subr.mxu0 0.0
    %212 = vmatpush1.msra.mxu0 %v31
    %213 = vmatprep.subr.mxu0 0.0
    %214 = vmatpush1.msra.mxu0 %v32
    %215 = vmatprep.subr.mxu0 0.0
    %216 = vmatpush1.msra.mxu0 0.0
    %217 = vmatprep.subr.mxu0 0.0
    %218 = vmatpush1.msra.mxu0 0.0
    %219 = vmatprep.subr.mxu0 0.0
    %220 = vmatpush1.msra.mxu0 0.0
    %221 = vmatprep.subr.mxu0 0.0
    %222 = vmatpush1.msra.mxu0 0.0
    %223 = vmatprep.subr.mxu0 0.0
    %224 = vmatpush1.msra.mxu0 0.0
    %225 = vmatprep.subr.mxu0 0.0
    %226 = vmatpush1.msra.mxu0 0.0
    %227 = vmatprep.subr.mxu0 0.0
    %228 = vmatpush1.msra.mxu0 0.0
    %229 = vmatprep.subr.mxu0 0.0
    %230 = vmatpush1.msra.mxu0 0.0
    %231 = vmatprep.subr.mxu0 0.0
    %232 = vmatpush1.msra.mxu0 0.0
    %233 = vmatprep.subr.mxu0 0.0
    %234 = vmatpush1.msra.mxu0 0.0
    %235 = vmatprep.subr.mxu0 0.0
    %236 = vmatpush1.msra.mxu0 0.0
    %237 = vmatprep.subr.mxu0 0.0
    %238 = vmatpush1.msra.mxu0 0.0
    %239 = vmatprep.subr.mxu0 0.0
    %240 = vmatpush1.msra.mxu0 0.0
    %241 = vmatprep.subr.mxu0 0.0
    %242 = vmatpush1.msra.mxu0 0.0
    %243 = vmatprep.subr.mxu0 0.0
    %244 = vmatpush1.msra.mxu0 0.0
    %245 = vmatprep.subr.mxu0 0.0
    %246 = vmatpush1.msra.mxu0 0.0
    %247 = vmatprep.subr.mxu0 0.0
    %248 = vmatpush1.msra.mxu0 0.0
    %249 = vmatprep.subr.mxu0 0.0
    %250 = vmatpush1.msra.mxu0 0.0
    %251 = vmatprep.subr.mxu0 0.0
    %252 = vmatpush1.msra.mxu0 0.0
    %253 = vmatprep.subr.mxu0 0.0
    %254 = vmatpush1.msra.mxu0 0.0
    %255 = vmatprep.subr.mxu0 0.0
    %256 = vmatpush1.msra.mxu0 0.0
    %257 = vmatprep.subr.mxu0 0.0
    %258 = vmatpush1.msra.mxu0 0.0
    %259 = vmatprep.subr.mxu0 0.0
    %260 = vmatpush1.msra.mxu0 0.0
    %261 = vmatprep.subr.mxu0 0.0
    %262 = vmatpush1.msra.mxu0 0.0
    %263 = vmatprep.mubr.f32.mxu0 0.0
    %264 = vmatmul.mubr.f32.gmra.mrb[0].mxu0 %v197
    %v265 = vpop.f32.mrb[0].mxu0
    %v266 = vadd.f32 %v195, %v265
    %v267 = vpop.f32.mrb[0].mxu0
    %268 = vdwg.mxu0
    %v269 = vsel %vm117, %v266, 0.0
    %v270 = vmax.f32 %v269, 0.0
    %v271 = vand.u32 2147483647, %v269
    %v272 = vsub.f32 0.0, %v271
    %v273 = vmul.f32 %v272, 1.442695
    %v274 = vpow.pop %v273
    %v275 = vadd.f32 %v274, 1.0
    %v276 = vlog2.pop %v275
    %v277 = vmul.f32 %v276, 0.6931472
    %v278 = vmul.f32 -0.5, %v274
    %v279 = vadd.f32 %v278, 1.0
    %v280 = vmul.f32 %v279, %v274
    %v281 = vand.u32 2147483647, %v274
    %vm282 = vcmp.lt.f32.partialorder %v281, 0.0004427343
    %v283 = vsel %vm282, %v280, %v277
    %v284 = vadd.f32 %v270, %v283
    %v285 = vmax.f32 %v284, 1e-30
    %287 = vrot.lane.b32.xlu0 %v266, 16
    %v288 = vpop.permute.xlu0 %287
    %v290 = vsub.f32 %v12, %v288
    %v291 = vrcp.pop %v285
    %v292 = vmul.f32 %v290, %v290
    %294 = vrot.lane.b32.xlu0 %v291, 8
    %v295 = vpop.permute.xlu0 %294
    %v297 = vmul.f32 %v292, %v295
    %v298 = vlog2.pop %v285
    %v299 = vmul.f32 %v298, 0.6931472
    %301 = vrot.lane.b32.xlu0 %v299, 8
    %v302 = vpop.permute.xlu0 %301
    %v304 = vadd.f32 %v297, %v302
    %306 = vrot.lane.b32.xlu0 %v304, 112
    %v307 = vpop.permute.xlu0 %306
    %vm309 = vcmask 64512
    %v310 = vsel %vm309, %v307, 0.0
    %311 = vadd.xlane.f32.xlu0 %v310
    %v312 = vpop.xlane.xlu0 %311
    %v313 = vadd.f32 %v312, 14.703016
    %v314 = vmul.f32 %v313, -0.5
    %v315 = vlaneseq
    %v316 = vand.u32 %v315, 127
    %vm317 = vcmp.lt.s32.totalorder %v316, 8
    %vm318 = vcmp.lt.s32.totalorder %v316, 16
    %v319 = vsel %vm318, %v284, %v314
    %v320 = vsel %vm317, %v269, %v319
    %321 = vst [vmem:[#allocation2] sm:$0xff] %v320
    // Predicated region
    $region10: #{tpu_custom_call.1} parent=1 // pred_check
      _
    $region11: #{tpu_custom_call.1} parent=1 // pred_check_branch
      %323 = sbr.rel (0) target = $region13
    $region12: #{tpu_custom_call.1} parent=1 // pred_region
      %s325 = ssub.s32 128, 128
      %326 = vsyncadd [#allocation3], %s325
      %s328 = sshll.u32 [#allocation2], 4
      %s329 = int_to_ptr.vmem [resolvable:$true] %s328
      %331 = dma.vmem_to_hbm [thread:$0]  %s329, 128, %s2, [#allocation3]
    $region13: #{tpu_custom_call.1} parent=1 // pred_fallthru
      _
    // Predicated region
    $region14: #{tpu_custom_call.1} parent=1 // pred_check
      _
    $region15: #{tpu_custom_call.1} parent=1 // pred_check_branch
      %333 = sbr.rel (0) target = $region17
    $region16: #{tpu_custom_call.1} parent=1 // pred_region
      %334 = dma.done [#allocation3], 128
    $region17: #{tpu_custom_call.1} parent=1 // pred_fallthru
      _
    %335 = vsyncpa [#allocation3], 1

</llo_original>
